<compile_context>
chip_gen: v6e
topology: v6e:2x2x1
jax: 0.10.0
libtpu: 0.0.40
codegen_flags: <defaults>
</compile_context>

<pallas_src>
import jax
import jax.numpy as jnp
from jax import lax
from jax.experimental import pallas as pl
from jax.experimental.pallas import tpu as pltpu


def _round_up(x, m):
    return (x + m - 1) // m * m


def _make_mlp_kernel(num_layers):
    """Fused kernel: one-hot embedding gather + split first matmul + MLP chain."""

    def kernel(d1_ref, d2_ref, idx_ref, table_ref, *rest):
        out_ref = rest[-1]
        wb = rest[:-1]  # [W0_d1, W0_d2, W0_ce, b0, W1, b1, ..., W_last, b_last]

        # --- in-kernel embedding gather as a one-hot MXU matmul (exact) ---
        tb = idx_ref.shape[0]
        cf = table_ref.shape[0]
        onehot = (idx_ref[...] ==
                  lax.broadcasted_iota(jnp.int32, (tb, cf), 1)).astype(table_ref.dtype)
        ce = jnp.dot(onehot, table_ref[...], preferred_element_type=jnp.float32)

        # --- layer 0: split matmul over (d1, d2, cell) -> no lane-offset concat ---
        x = jnp.dot(d1_ref[...], wb[0][...], preferred_element_type=jnp.float32)
        x = x + jnp.dot(d2_ref[...], wb[1][...], preferred_element_type=jnp.float32)
        x = x + jnp.dot(ce.astype(wb[2].dtype), wb[2][...],
                        preferred_element_type=jnp.float32)
        x = x + wb[3][...]          # f32 bias
        x = jnp.maximum(x, 0.0)     # ReLU (f32 epilogue)

        # --- remaining layers: bf16 dots, f32 epilogue; last layer has no ReLU ---
        for li in range(1, num_layers):
            w = wb[2 + 2 * li]
            b = wb[3 + 2 * li]
            x = jnp.dot(x.astype(w.dtype), w[...],
                        preferred_element_type=jnp.float32) + b[...]
            if li < num_layers - 1:
                x = jnp.maximum(x, 0.0)

        out_ref[...] = x.astype(out_ref.dtype)

    return kernel


def dnn_predictor_forward(drug_embedding1, drug_embedding2, cellline_idx, params,
                          *, max_batch_tile=512):
    """Pallas-backed forward pass of DNN_predictor (se_labels_batch=None)."""
    weights = params["weights"]
    biases = params["biases"]
    table = params["embedding"]

    batch = drug_embedding1.shape[0]
    d1_dim = drug_embedding1.shape[1]
    d2_dim = drug_embedding2.shape[1]
    emd_feats = table.shape[1]
    cf = table.shape[0]
    num_layers = len(weights)
    out_dim = weights[-1].shape[1]

    bf = jnp.bfloat16

    # ---- batch tiling: sublane-aligned tile, zero-pad ragged tail ----
    tb = max(16, min(max_batch_tile, _round_up(batch, 16)))
    b_pad = _round_up(batch, tb)
    n_tiles = b_pad // tb

    def pad_rows(x, rows):
        return jnp.pad(x, ((0, rows - x.shape[0]), (0, 0)))

    d1 = pad_rows(drug_embedding1.astype(bf), b_pad)
    d2 = pad_rows(drug_embedding2.astype(bf), b_pad)
    idx2d = jnp.pad(cellline_idx.astype(jnp.int32).reshape(-1, 1),
                    ((0, b_pad - batch), (0, 0)))

    # embedding table: pad rows to a sublane multiple, bf16 for the MXU
    cf_pad = _round_up(cf, 8)
    table_p = jnp.pad(table.astype(bf), ((0, cf_pad - cf), (0, 0)))

    # ---- pad every layer's output width to a multiple of 128 lanes ----
    n_pads = [_round_up(w.shape[1], 128) for w in weights]

    def pad_w(w, kp, np_):
        return jnp.pad(w, ((0, kp - w.shape[0]), (0, np_ - w.shape[1]))).astype(bf)

    def pad_b(b, np_):
        return jnp.pad(b, (0, np_ - b.shape[0])).reshape(1, -1).astype(jnp.float32)

    w0 = weights[0]
    n0p = n_pads[0]
    # split the first layer along its K axis (pre-concat operands)
    w0a = pad_w(w0[:d1_dim], d1_dim, n0p)
    w0b = pad_w(w0[d1_dim:d1_dim + d2_dim], d2_dim, n0p)
    w0c = pad_w(w0[d1_dim + d2_dim:], emd_feats, n0p)
    b0 = pad_b(biases[0], n0p)

    wb_args = [w0a, w0b, w0c, b0]
    wb_specs = [
        pl.BlockSpec((d1_dim, n0p), lambda i: (0, 0)),
        pl.BlockSpec((d2_dim, n0p), lambda i: (0, 0)),
        pl.BlockSpec((emd_feats, n0p), lambda i: (0, 0)),
        pl.BlockSpec((1, n0p), lambda i: (0, 0)),
    ]
    for li in range(1, num_layers):
        kp, np_ = n_pads[li - 1], n_pads[li]
        wb_args.append(pad_w(weights[li], kp, np_))
        wb_args.append(pad_b(biases[li], np_))
        wb_specs.append(pl.BlockSpec((kp, np_), lambda i: (0, 0)))
        wb_specs.append(pl.BlockSpec((1, np_), lambda i: (0, 0)))

    out_pad = n_pads[-1]

    in_specs = [
        pl.BlockSpec((tb, d1_dim), lambda i: (i, 0)),     # d1 tile (pipelined)
        pl.BlockSpec((tb, d2_dim), lambda i: (i, 0)),     # d2 tile (pipelined)
        pl.BlockSpec((tb, 1), lambda i: (i, 0)),          # cellline_idx tile
        pl.BlockSpec((cf_pad, emd_feats), lambda i: (0, 0)),  # table (resident)
    ] + wb_specs

    out = pl.pallas_call(
        _make_mlp_kernel(num_layers),
        grid=(n_tiles,),
        out_shape=jax.ShapeDtypeStruct((b_pad, out_pad), jnp.float32),
        in_specs=in_specs,
        out_specs=pl.BlockSpec((tb, out_pad), lambda i: (i, 0)),
        compiler_params=pltpu.CompilerParams(
            dimension_semantics=("parallel",)),
    )(d1, d2, idx2d, table_p, *wb_args)

    return out[:batch, :out_dim]


def init_params(key, in_feats, cellline_feats, emd_feats, layer_list):
    """Deterministic synthetic parameters with the shapes implied by __init__."""
    keys = jax.random.split(key, 2 * len(layer_list) + 1)
    params = {"weights": [], "biases": []}
    prev = in_feats + emd_feats
    for i, h in enumerate(layer_list):
        wk, bk = keys[2 * i], keys[2 * i + 1]
        scale = 1.0 / jnp.sqrt(jnp.float32(prev))
        params["weights"].append(jax.random.uniform(wk, (prev, h), jnp.float32, -scale, scale))
        params["biases"].append(jax.random.uniform(bk, (h,), jnp.float32, -scale, scale))
        prev = h
    params["embedding"] = jax.random.normal(keys[-1], (cellline_feats, emd_feats), jnp.float32)
    return params


def reference_forward(drug1, drug2, cellline_idx, params):
    """Pure-JAX reference mirroring the PyTorch forward (eval mode), with the
    same numerics as the kernel (bf16 MXU operands, f32 accumulation)."""
    bf = jnp.bfloat16
    cell = jnp.take(params["embedding"].astype(bf), cellline_idx, axis=0)
    x = jnp.concatenate([drug1.astype(bf), drug2.astype(bf), cell], axis=1)
    n = len(params["weights"])
    for i, (w, b) in enumerate(zip(params["weights"], params["biases"])):
        x = jnp.dot(x.astype(bf), w.astype(bf),
                    preferred_element_type=jnp.float32) + b
        if i < n - 1:
            x = jnp.maximum(x, 0.0)
    return x


if __name__ == "__main__":
    # Small shapes consistent with the module:
    #   each drug embedding is 16-dim -> in_feats = 32 (drug1 + drug2)
    #   cellline_feats = 10 vocab entries, emd_feats = 8, layer_list = [64, 32, 8]
    batch = 4
    drug_dim = 16
    in_feats = 2 * drug_dim
    cellline_feats = 10
    emd_feats = 8
    layer_list = [64, 32, 8]

    key = jax.random.PRNGKey(0)
    k_params, k_d1, k_d2, k_idx = jax.random.split(key, 4)

    params = init_params(k_params, in_feats, cellline_feats, emd_feats, layer_list)
    drug1 = jax.random.normal(k_d1, (batch, drug_dim), jnp.float32)
    drug2 = jax.random.normal(k_d2, (batch, drug_dim), jnp.float32)
    cellline_idx = jax.random.randint(k_idx, (batch,), 0, cellline_feats, jnp.int32)

    out = dnn_predictor_forward(drug1, drug2, cellline_idx, params)
    out = jax.block_until_ready(out)

    ref = reference_forward(drug1, drug2, cellline_idx, params)
    assert out.shape == (batch, layer_list[-1])
    assert jnp.allclose(out, ref, atol=1e-4, rtol=1e-4), "Pallas output mismatch vs reference"

    print("KERNEL_OK")
</pallas_src>

<mosaic_0001>
module attributes {stable_mosaic.version = 11 : i64} {
  func.func @kernel(%arg0: i32, %arg1: memref<16x16xbf16, #tpu.memory_space<vmem>>, %arg2: memref<16x16xbf16, #tpu.memory_space<vmem>>, %arg3: memref<16x1xi32, #tpu.memory_space<vmem>>, %arg4: memref<16x8xbf16, #tpu.memory_space<vmem>>, %arg5: memref<16x128xbf16, #tpu.memory_space<vmem>>, %arg6: memref<16x128xbf16, #tpu.memory_space<vmem>>, %arg7: memref<8x128xbf16, #tpu.memory_space<vmem>>, %arg8: memref<1x128xf32, #tpu.memory_space<vmem>>, %arg9: memref<128x128xbf16, #tpu.memory_space<vmem>>, %arg10: memref<1x128xf32, #tpu.memory_space<vmem>>, %arg11: memref<128x128xbf16, #tpu.memory_space<vmem>>, %arg12: memref<1x128xf32, #tpu.memory_space<vmem>>, %arg13: memref<16x128xf32, #tpu.memory_space<vmem>>) attributes {dimension_semantics = [#tpu.dimension_semantics<parallel>], iteration_bounds = array<i64: 1>, scalar_prefetch = 0 : i64, scratch_operands = 0 : i64, tpu.core_type = #tpu.core_type<tc>, window_params = [{transform_indices = @transform_0, window_bounds = array<i64: 16, 16>}, {transform_indices = @transform_1, window_bounds = array<i64: 16, 16>}, {transform_indices = @transform_2, window_bounds = array<i64: 16, 1>}, {pipeline_mode = #tpu.pipeline_mode<synchronous>, transform_indices = @transform_3, window_bounds = array<i64: 16, 8>}, {pipeline_mode = #tpu.pipeline_mode<synchronous>, transform_indices = @transform_4, window_bounds = array<i64: 16, 128>}, {pipeline_mode = #tpu.pipeline_mode<synchronous>, transform_indices = @transform_5, window_bounds = array<i64: 16, 128>}, {pipeline_mode = #tpu.pipeline_mode<synchronous>, transform_indices = @transform_6, window_bounds = array<i64: 8, 128>}, {pipeline_mode = #tpu.pipeline_mode<synchronous>, transform_indices = @transform_7, window_bounds = array<i64: 1, 128>}, {pipeline_mode = #tpu.pipeline_mode<synchronous>, transform_indices = @transform_8, window_bounds = array<i64: 128, 128>}, {pipeline_mode = #tpu.pipeline_mode<synchronous>, transform_indices = @transform_9, window_bounds = array<i64: 1, 128>}, {pipeline_mode = #tpu.pipeline_mode<synchronous>, transform_indices = @transform_10, window_bounds = array<i64: 128, 128>}, {pipeline_mode = #tpu.pipeline_mode<synchronous>, transform_indices = @transform_11, window_bounds = array<i64: 1, 128>}, {transform_indices = @transform_12, window_bounds = array<i64: 16, 128>}]} {
    %c0 = arith.constant 0 : index
    %c0_0 = arith.constant 0 : index
    %0 = vector.load %arg3[%c0, %c0_0] : memref<16x1xi32, #tpu.memory_space<vmem>>, vector<16x1xi32>
    %1 = tpu.iota {dimensions = array<i32: 1>} : vector<16x16xi32>
    %2 = vector.broadcast %0 : vector<16x1xi32> to vector<16x16xi32>
    %3 = arith.cmpi eq, %2, %1 : vector<16x16xi32>
    %4 = arith.extui %3 : vector<16x16xi1> to vector<16x16xi32>
    %5 = arith.sitofp %4 : vector<16x16xi32> to vector<16x16xf32>
    %6 = arith.truncf %5 : vector<16x16xf32> to vector<16x16xbf16>
    %c0_1 = arith.constant 0 : index
    %c0_2 = arith.constant 0 : index
    %7 = vector.load %arg4[%c0_1, %c0_2] : memref<16x8xbf16, #tpu.memory_space<vmem>>, vector<16x8xbf16>
    %cst = arith.constant dense<0.000000e+00> : vector<16x8xf32>
    %8 = tpu.matmul %6, %7, %cst {dimension_numbers = #tpu.dot_dimension_numbers<[1], [0], [0], [1], [0, 0, 1, 1], [], []>} : vector<16x16xbf16>, vector<16x8xbf16>, vector<16x8xf32> -> vector<16x8xf32>
    %c0_3 = arith.constant 0 : index
    %c0_4 = arith.constant 0 : index
    %9 = vector.load %arg1[%c0_3, %c0_4] : memref<16x16xbf16, #tpu.memory_space<vmem>>, vector<16x16xbf16>
    %c0_5 = arith.constant 0 : index
    %c0_6 = arith.constant 0 : index
    %10 = vector.load %arg5[%c0_5, %c0_6] : memref<16x128xbf16, #tpu.memory_space<vmem>>, vector<16x128xbf16>
    %cst_7 = arith.constant dense<0.000000e+00> : vector<16x128xf32>
    %11 = tpu.matmul %9, %10, %cst_7 {dimension_numbers = #tpu.dot_dimension_numbers<[1], [0], [0], [1], [0, 0, 1, 1], [], []>} : vector<16x16xbf16>, vector<16x128xbf16>, vector<16x128xf32> -> vector<16x128xf32>
    %c0_8 = arith.constant 0 : index
    %c0_9 = arith.constant 0 : index
    %12 = vector.load %arg2[%c0_8, %c0_9] : memref<16x16xbf16, #tpu.memory_space<vmem>>, vector<16x16xbf16>
    %c0_10 = arith.constant 0 : index
    %c0_11 = arith.constant 0 : index
    %13 = vector.load %arg6[%c0_10, %c0_11] : memref<16x128xbf16, #tpu.memory_space<vmem>>, vector<16x128xbf16>
    %cst_12 = arith.constant dense<0.000000e+00> : vector<16x128xf32>
    %14 = tpu.matmul %12, %13, %cst_12 {dimension_numbers = #tpu.dot_dimension_numbers<[1], [0], [0], [1], [0, 0, 1, 1], [], []>} : vector<16x16xbf16>, vector<16x128xbf16>, vector<16x128xf32> -> vector<16x128xf32>
    %15 = arith.addf %11, %14 : vector<16x128xf32>
    %16 = arith.truncf %8 : vector<16x8xf32> to vector<16x8xbf16>
    %c0_13 = arith.constant 0 : index
    %c0_14 = arith.constant 0 : index
    %17 = vector.load %arg7[%c0_13, %c0_14] : memref<8x128xbf16, #tpu.memory_space<vmem>>, vector<8x128xbf16>
    %cst_15 = arith.constant dense<0.000000e+00> : vector<16x128xf32>
    %18 = tpu.matmul %16, %17, %cst_15 {dimension_numbers = #tpu.dot_dimension_numbers<[1], [0], [0], [1], [0, 0, 1, 1], [], []>} : vector<16x8xbf16>, vector<8x128xbf16>, vector<16x128xf32> -> vector<16x128xf32>
    %19 = arith.addf %15, %18 : vector<16x128xf32>
    %c0_16 = arith.constant 0 : index
    %c0_17 = arith.constant 0 : index
    %20 = vector.load %arg8[%c0_16, %c0_17] : memref<1x128xf32, #tpu.memory_space<vmem>>, vector<1x128xf32>
    %21 = vector.broadcast %20 : vector<1x128xf32> to vector<16x128xf32>
    %22 = arith.addf %19, %21 : vector<16x128xf32>
    %cst_18 = arith.constant 0.000000e+00 : f32
    %23 = vector.broadcast %cst_18 : f32 to vector<16x128xf32>
    %24 = arith.maximumf %22, %23 : vector<16x128xf32>
    %25 = arith.truncf %24 : vector<16x128xf32> to vector<16x128xbf16>
    %c0_19 = arith.constant 0 : index
    %c0_20 = arith.constant 0 : index
    %26 = vector.load %arg9[%c0_19, %c0_20] : memref<128x128xbf16, #tpu.memory_space<vmem>>, vector<128x128xbf16>
    %cst_21 = arith.constant dense<0.000000e+00> : vector<16x128xf32>
    %27 = tpu.matmul %25, %26, %cst_21 {dimension_numbers = #tpu.dot_dimension_numbers<[1], [0], [0], [1], [0, 0, 1, 1], [], []>} : vector<16x128xbf16>, vector<128x128xbf16>, vector<16x128xf32> -> vector<16x128xf32>
    %c0_22 = arith.constant 0 : index
    %c0_23 = arith.constant 0 : index
    %28 = vector.load %arg10[%c0_22, %c0_23] : memref<1x128xf32, #tpu.memory_space<vmem>>, vector<1x128xf32>
    %29 = vector.broadcast %28 : vector<1x128xf32> to vector<16x128xf32>
    %30 = arith.addf %27, %29 : vector<16x128xf32>
    %cst_24 = arith.constant 0.000000e+00 : f32
    %31 = vector.broadcast %cst_24 : f32 to vector<16x128xf32>
    %32 = arith.maximumf %30, %31 : vector<16x128xf32>
    %33 = arith.truncf %32 : vector<16x128xf32> to vector<16x128xbf16>
    %c0_25 = arith.constant 0 : index
    %c0_26 = arith.constant 0 : index
    %34 = vector.load %arg11[%c0_25, %c0_26] : memref<128x128xbf16, #tpu.memory_space<vmem>>, vector<128x128xbf16>
    %cst_27 = arith.constant dense<0.000000e+00> : vector<16x128xf32>
    %35 = tpu.matmul %33, %34, %cst_27 {dimension_numbers = #tpu.dot_dimension_numbers<[1], [0], [0], [1], [0, 0, 1, 1], [], []>} : vector<16x128xbf16>, vector<128x128xbf16>, vector<16x128xf32> -> vector<16x128xf32>
    %c0_28 = arith.constant 0 : index
    %c0_29 = arith.constant 0 : index
    %36 = vector.load %arg12[%c0_28, %c0_29] : memref<1x128xf32, #tpu.memory_space<vmem>>, vector<1x128xf32>
    %37 = vector.broadcast %36 : vector<1x128xf32> to vector<16x128xf32>
    %38 = arith.addf %35, %37 : vector<16x128xf32>
    %c0_30 = arith.constant 0 : index
    %c0_31 = arith.constant 0 : index
    %39 = vector.load %arg13[%c0_30, %c0_31] : memref<16x128xf32, #tpu.memory_space<vmem>>, vector<16x128xf32>
    tpu.vector_store %arg13[%c0_30, %c0_31], %38 {strides = array<i32>} : memref<16x128xf32, #tpu.memory_space<vmem>>, vector<16x128xf32>,
    return
  }
  func.func @transform_0(%arg0: i32) -> (i32, i32) {
    %c0_i32 = arith.constant 0 : i32
    %c0_i32_0 = arith.constant 0 : i32
    return %arg0, %c0_i32 : i32, i32
  }
  func.func @transform_1(%arg0: i32) -> (i32, i32) {
    %c0_i32 = arith.constant 0 : i32
    %c0_i32_0 = arith.constant 0 : i32
    return %arg0, %c0_i32 : i32, i32
  }
  func.func @transform_2(%arg0: i32) -> (i32, i32) {
    %c0_i32 = arith.constant 0 : i32
    %c0_i32_0 = arith.constant 0 : i32
    return %arg0, %c0_i32 : i32, i32
  }
  func.func @transform_3(%arg0: i32) -> (i32, i32) {
    %c0_i32 = arith.constant 0 : i32
    %c0_i32_0 = arith.constant 0 : i32
    %c0_i32_1 = arith.constant 0 : i32
    return %c0_i32, %c0_i32_0 : i32, i32
  }
  func.func @transform_4(%arg0: i32) -> (i32, i32) {
    %c0_i32 = arith.constant 0 : i32
    %c0_i32_0 = arith.constant 0 : i32
    %c0_i32_1 = arith.constant 0 : i32
    return %c0_i32, %c0_i32_0 : i32, i32
  }
  func.func @transform_5(%arg0: i32) -> (i32, i32) {
    %c0_i32 = arith.constant 0 : i32
    %c0_i32_0 = arith.constant 0 : i32
    %c0_i32_1 = arith.constant 0 : i32
    return %c0_i32, %c0_i32_0 : i32, i32
  }
  func.func @transform_6(%arg0: i32) -> (i32, i32) {
    %c0_i32 = arith.constant 0 : i32
    %c0_i32_0 = arith.constant 0 : i32
    %c0_i32_1 = arith.constant 0 : i32
    return %c0_i32, %c0_i32_0 : i32, i32
  }
  func.func @transform_7(%arg0: i32) -> (i32, i32) {
    %c0_i32 = arith.constant 0 : i32
    %c0_i32_0 = arith.constant 0 : i32
    %c0_i32_1 = arith.constant 0 : i32
    return %c0_i32, %c0_i32_0 : i32, i32
  }
  func.func @transform_8(%arg0: i32) -> (i32, i32) {
    %c0_i32 = arith.constant 0 : i32
    %c0_i32_0 = arith.constant 0 : i32
    %c0_i32_1 = arith.constant 0 : i32
    return %c0_i32, %c0_i32_0 : i32, i32
  }
  func.func @transform_9(%arg0: i32) -> (i32, i32) {
    %c0_i32 = arith.constant 0 : i32
    %c0_i32_0 = arith.constant 0 : i32
    %c0_i32_1 = arith.constant 0 : i32
    return %c0_i32, %c0_i32_0 : i32, i32
  }
  func.func @transform_10(%arg0: i32) -> (i32, i32) {
    %c0_i32 = arith.constant 0 : i32
    %c0_i32_0 = arith.constant 0 : i32
    %c0_i32_1 = arith.constant 0 : i32
    return %c0_i32, %c0_i32_0 : i32, i32
  }
  func.func @transform_11(%arg0: i32) -> (i32, i32) {
    %c0_i32 = arith.constant 0 : i32
    %c0_i32_0 = arith.constant 0 : i32
    %c0_i32_1 = arith.constant 0 : i32
    return %c0_i32, %c0_i32_0 : i32, i32
  }
  func.func @transform_12(%arg0: i32) -> (i32, i32) {
    %c0_i32 = arith.constant 0 : i32
    %c0_i32_0 = arith.constant 0 : i32
    return %arg0, %c0_i32 : i32, i32
  }
}

</mosaic_0001>

<llo_original>
// kernel: tpu_custom_call.1
$region0: #{tpu_custom_call.1}
  #allocation0 [shape = 'u32[]', space=smem, size = 0x4, offset = 0x4, fixed_abs, tag = 'smem constant byte address 0x4 - core index']
  #allocation1 [shape = 'u32[144,128]{1,0:T(1,128)}', space=vmem, size = 0x12000, scoped, tag = 'internal scratch']
  %s0 = inlined_call_operand.vmem [shape: bf16[16,16], index: 0, kind: input, shape index: {}]
  %s1 = inlined_call_operand.vmem [shape: bf16[16,16], index: 1, kind: input, shape index: {}]
  %s2 = inlined_call_operand.vmem [shape: s32[16,1], index: 2, kind: input, shape index: {}]
  %s3 = inlined_call_operand.vmem [shape: bf16[16,8], index: 3, kind: input, shape index: {}]
  %s4 = inlined_call_operand.vmem [shape: bf16[16,128], index: 4, kind: input, shape index: {}]
  %s5 = inlined_call_operand.vmem [shape: bf16[16,128], index: 5, kind: input, shape index: {}]
  %s6 = inlined_call_operand.vmem [shape: bf16[8,128], index: 6, kind: input, shape index: {}]
  %s7 = inlined_call_operand.vmem [shape: f32[1,128], index: 7, kind: input, shape index: {}]
  %s8 = inlined_call_operand.hbm [shape: bf16[128,128], index: 8, kind: input, shape index: {}]
  %s9 = inlined_call_operand.vmem [shape: f32[1,128], index: 9, kind: input, shape index: {}]
  %s10 = inlined_call_operand.hbm [shape: bf16[128,128], index: 10, kind: input, shape index: {}]
  %s11 = inlined_call_operand.vmem [shape: f32[1,128], index: 11, kind: input, shape index: {}]
  %s12 = inlined_call_operand.hbm [shape: f32[16,128], index: 12, kind: output, shape index: {}]
  %s13 = sld [smem:[#allocation0]]
  $region66: #{tpu_custom_call.1} parent=0
    _
  %s15 = ssub.s32 1, %s13
  %s16 = scalar_select 0, %s15, %s13
  $region1: #{tpu_custom_call.1} parent=0
    #allocation2 [shape = 'u8[32768]{0}', space=vmem, size = 0x8000, scoped, tag = 'input window, operand 8, single buffered']
    #allocation3 [shape = 's32[1]{0}', space=sflag, size = 0x4, scoped, tag = 'scoped memory for tpu_custom_call.1']
    #allocation4 [shape = 's32[1]{0}', space=sflag, size = 0x4, scoped, tag = 'scoped memory for tpu_custom_call.1']
    #allocation5 [shape = 'u8[32768]{0}', space=vmem, size = 0x8000, scoped, tag = 'input window, operand 10, single buffered']
    #allocation6 [shape = 's32[1]{0}', space=sflag, size = 0x4, scoped, tag = 'scoped memory for tpu_custom_call.1']
    #allocation7 [shape = 'u8[8192]{0}', space=vmem, size = 0x2000, scoped, tag = 'output window, operand 0, single buffered']
    %17 = vsyncpa [#allocation3], 0
    %18 = vsyncpa [#allocation6], 0
    %19 = vsyncpa [#allocation4], 0
    // Predicated region
    $region2: #{tpu_custom_call.1} parent=1 // pred_check
      _
    $region3: #{tpu_custom_call.1} parent=1 // pred_check_branch
      %21 = sbr.rel (0) target = $region5
    $region4: #{tpu_custom_call.1} parent=1 // pred_region
      _
    $region5: #{tpu_custom_call.1} parent=1 // pred_fallthru
      _
    // Predicated region
    $region6: #{tpu_custom_call.1} parent=1 // pred_check
      _
    $region7: #{tpu_custom_call.1} parent=1 // pred_check_branch
      %23 = sbr.rel (0) target = $region9
    $region8: #{tpu_custom_call.1} parent=1 // pred_region
      _
    $region9: #{tpu_custom_call.1} parent=1 // pred_fallthru
      _
    // Predicated region
    $region10: #{tpu_custom_call.1} parent=1 // pred_check
      _
    $region11: #{tpu_custom_call.1} parent=1 // pred_check_branch
      %25 = sbr.rel (0) target = $region13
    $region12: #{tpu_custom_call.1} parent=1 // pred_region
      _
    $region13: #{tpu_custom_call.1} parent=1 // pred_fallthru
      _
    // Predicated region
    $region14: #{tpu_custom_call.1} parent=1 // pred_check
      _
    $region15: #{tpu_custom_call.1} parent=1 // pred_check_branch
      %27 = sbr.rel (0) target = $region17
    $region16: #{tpu_custom_call.1} parent=1 // pred_region
      _
    $region17: #{tpu_custom_call.1} parent=1 // pred_fallthru
      _
    // Predicated region
    $region18: #{tpu_custom_call.1} parent=1 // pred_check
      _
    $region19: #{tpu_custom_call.1} parent=1 // pred_check_branch
      %29 = sbr.rel (0) target = $region21
    $region20: #{tpu_custom_call.1} parent=1 // pred_region
      _
    $region21: #{tpu_custom_call.1} parent=1 // pred_fallthru
      _
    // Predicated region
    $region22: #{tpu_custom_call.1} parent=1 // pred_check
      _
    $region23: #{tpu_custom_call.1} parent=1 // pred_check_branch
      %31 = sbr.rel (0) target = $region25
    $region24: #{tpu_custom_call.1} parent=1 // pred_region
      _
    $region25: #{tpu_custom_call.1} parent=1 // pred_fallthru
      _
    // Predicated region
    $region26: #{tpu_custom_call.1} parent=1 // pred_check
      _
    $region27: #{tpu_custom_call.1} parent=1 // pred_check_branch
      %33 = sbr.rel (0) target = $region29
    $region28: #{tpu_custom_call.1} parent=1 // pred_region
      _
    $region29: #{tpu_custom_call.1} parent=1 // pred_fallthru
      _
    // Predicated region
    $region30: #{tpu_custom_call.1} parent=1 // pred_check
      _
    $region31: #{tpu_custom_call.1} parent=1 // pred_check_branch
      %35 = sbr.rel (0) target = $region33
    $region32: #{tpu_custom_call.1} parent=1 // pred_region
      _
    $region33: #{tpu_custom_call.1} parent=1 // pred_fallthru
      _
    // Predicated region
    $region34: #{tpu_custom_call.1} parent=1 // pred_check
      _
    $region35: #{tpu_custom_call.1} parent=1 // pred_check_branch
      %37 = sbr.rel (0) target = $region37
    $region36: #{tpu_custom_call.1} parent=1 // pred_region
      %s39 = ssub.s32 1024, 1024
      %40 = vsyncadd [#allocation3], %s39
      %s41 = sshll.u32 [#allocation2], 4
      %s42 = int_to_ptr.vmem [resolvable:$true] %s41
      %47 = dma.hbm_to_vmem [thread:$0]  %s8, 1024, %s42, [#allocation3], 64, 64, 4
    $region37: #{tpu_custom_call.1} parent=1 // pred_fallthru
      _
    // Predicated region
    $region38: #{tpu_custom_call.1} parent=1 // pred_check
      _
    $region39: #{tpu_custom_call.1} parent=1 // pred_check_branch
      %49 = sbr.rel (0) target = $region41
    $region40: #{tpu_custom_call.1} parent=1 // pred_region
      _
    $region41: #{tpu_custom_call.1} parent=1 // pred_fallthru
      _
    // Predicated region
    $region42: #{tpu_custom_call.1} parent=1 // pred_check
      _
    $region43: #{tpu_custom_call.1} parent=1 // pred_check_branch
      %51 = sbr.rel (0) target = $region45
    $region44: #{tpu_custom_call.1} parent=1 // pred_region
      %s53 = ssub.s32 1024, 1024
      %54 = vsyncadd [#allocation6], %s53
      %s55 = sshll.u32 [#allocation5], 4
      %s56 = int_to_ptr.vmem [resolvable:$true] %s55
      %61 = dma.hbm_to_vmem [thread:$0]  %s10, 1024, %s56, [#allocation6], 64, 64, 4
    $region45: #{tpu_custom_call.1} parent=1 // pred_fallthru
      _
    // Predicated region
    $region46: #{tpu_custom_call.1} parent=1 // pred_check
      _
    $region47: #{tpu_custom_call.1} parent=1 // pred_check_branch
      %63 = sbr.rel (0) target = $region49
    $region48: #{tpu_custom_call.1} parent=1 // pred_region
      _
    $region49: #{tpu_custom_call.1} parent=1 // pred_fallthru
      _
    // Predicated region
    $region50: #{tpu_custom_call.1} parent=1 // pred_check
      _
    $region51: #{tpu_custom_call.1} parent=1 // pred_check_branch
      %65 = sbr.rel (0) target = $region53
    $region52: #{tpu_custom_call.1} parent=1 // pred_region
      %66 = dma.done [#allocation3], 1024
    $region53: #{tpu_custom_call.1} parent=1 // pred_fallthru
      _
    // Predicated region
    $region54: #{tpu_custom_call.1} parent=1 // pred_check
      _
    $region55: #{tpu_custom_call.1} parent=1 // pred_check_branch
      %68 = sbr.rel (0) target = $region57
    $region56: #{tpu_custom_call.1} parent=1 // pred_region
      %69 = dma.done [#allocation6], 1024
    $region57: #{tpu_custom_call.1} parent=1 // pred_fallthru
      _
    %v71 = vld [vmem:[%s2] sm:$0xff]
    %v72 = vld [vmem:[%s2 + $0x8] sm:$0xff]
    %v73 = vlaneseq
    %v74 = vand.u32 %v73, 127
    %75 = vset.pattern.permute.xlu0 0
    %76 = vperm.xlu0 %75, %v71
    %v77 = vpop.permute.xlu0 %76
    %78 = vset.pattern.permute.xlu0 0
    %79 = vperm.xlu0 %78, %v72
    %v80 = vpop.permute.xlu0 %79
    %vm81 = vcmp.eq.s32.totalorder %v77, %v74
    %vm82 = vcmp.eq.s32.totalorder %v80, %v74
    %v83 = vsel %vm81, 1, 0
    %v84 = vsel %vm82, 1, 0
    %v85 = vcvt.s32.f32 %v83
    %v86 = vcvt.s32.f32 %v84
    %v87 = vpack.c.bf16 %v86, %v85
    %v88 = vld [vmem:[%s3] sm:$0xf]
    %v89 = vld [vmem:[%s3 + $0x4] sm:$0xf]
    %v92 = vunpack.c.l.b16 %v88
    %v93 = vunpack.c.l.b16 %v89
    %v94 = vpack.c.b16 %v93, %v92
    %vm96 = vcmask 130048
    %v98 = vsel %vm96, %v87, 0
    %100 = vmatprep.subr.bf16.mxu0 0
    %101 = vmatpush1.bf16.msra.mxu0 0
    %102 = vmatprep.subr.bf16.mxu0 0
    %103 = vmatpush1.bf16.msra.mxu0 0
    %104 = vmatprep.subr.bf16.mxu0 0
    %105 = vmatpush1.bf16.msra.mxu0 0
    %106 = vmatprep.subr.bf16.mxu0 0
    %107 = vmatpush1.bf16.msra.mxu0 0
    %108 = vmatprep.subr.bf16.mxu0 0
    %109 = vmatpush1.bf16.msra.mxu0 0
    %110 = vmatprep.subr.bf16.mxu0 0
    %111 = vmatpush1.bf16.msra.mxu0 0
    %112 = vmatprep.subr.bf16.mxu0 0
    %113 = vmatpush1.bf16.msra.mxu0 0
    %114 = vmatprep.subr.bf16.mxu0 0
    %115 = vmatpush1.bf16.msra.mxu0 %v94
    %116 = vmatprep.subr.bf16.mxu0 0
    %117 = vmatpush2.bf16.msra.mxu0 0
    %118 = vmatprep.subr.bf16.mxu0 0
    %119 = vmatpush2.bf16.msra.mxu0 0
    %120 = vmatprep.subr.bf16.mxu0 0
    %121 = vmatpush2.bf16.msra.mxu0 0
    %122 = vmatprep.subr.bf16.mxu0 0
    %123 = vmatpush2.bf16.msra.mxu0 0
    %124 = vmatprep.subr.bf16.mxu0 0
    %125 = vmatpush2.bf16.msra.mxu0 0
    %126 = vmatprep.subr.bf16.mxu0 0
    %127 = vmatpush2.bf16.msra.mxu0 0
    %128 = vmatprep.subr.bf16.mxu0 0
    %129 = vmatpush2.bf16.msra.mxu0 0
    %130 = vmatprep.subr.bf16.mxu0 0
    %131 = vmatpush2.bf16.msra.mxu0 0
    %132 = vmatprep.mubr.bf16.mxu0 0
    %133 = vmatmul.mubr.bf16.gmra.mxu0 %v98
    %v134 = vpop.f32.mrf.mxu0
    %v135 = vadd.f32 0.0, %v134
    %v136 = vpop.f32.mrf.mxu0
    %v137 = vpop.f32.mrf.mxu0
    %v138 = vadd.f32 0.0, %v137
    %v139 = vpop.f32.mrf.mxu0
    %140 = vdwg.mxu0
    %v141 = vld [vmem:[%s0] sm:$0xf]
    %v142 = vld [vmem:[%s0 + $0x4] sm:$0xf]
    %v143 = vld [vmem:[%s4] sm:$0xf]
    %v144 = vld [vmem:[%s4 + $0x4] sm:$0xf]
    %v145 = vld [vmem:[%s1] sm:$0xf]
    %v146 = vld [vmem:[%s1 + $0x4] sm:$0xf]
    %v147 = vld [vmem:[%s5] sm:$0xf]
    %v148 = vld [vmem:[%s5 + $0x4] sm:$0xf]
    %v151 = vunpack.c.l.b16 %v145
    %v152 = vunpack.c.l.b16 %v146
    %v153 = vpack.c.b16 %v152, %v151
    %v156 = vunpack.c.l.b16 %v147
    %v157 = vunpack.c.l.b16 %v148
    %v158 = vpack.c.b16 %v157, %v156
    %v161 = vsel %vm96, %v153, 0
    %163 = vmatprep.subr.bf16.mxu0 0
    %164 = vmatpush1.bf16.msra.mxu0 0
    %165 = vmatprep.subr.bf16.mxu0 0
    %166 = vmatpush1.bf16.msra.mxu0 0
    %167 = vmatprep.subr.bf16.mxu0 0
    %168 = vmatpush1.bf16.msra.mxu0 0
    %169 = vmatprep.subr.bf16.mxu0 0
    %170 = vmatpush1.bf16.msra.mxu0 0
    %171 = vmatprep.subr.bf16.mxu0 0
    %172 = vmatpush1.bf16.msra.mxu0 0
    %173 = vmatprep.subr.bf16.mxu0 0
    %174 = vmatpush1.bf16.msra.mxu0 0
    %175 = vmatprep.subr.bf16.mxu0 0
    %176 = vmatpush1.bf16.msra.mxu0 0
    %177 = vmatprep.subr.bf16.mxu0 0
    %178 = vmatpush1.bf16.msra.mxu0 %v158
    %179 = vmatprep.subr.bf16.mxu0 0
    %180 = vmatpush2.bf16.msra.mxu0 0
    %181 = vmatprep.subr.bf16.mxu0 0
    %182 = vmatpush2.bf16.msra.mxu0 0
    %183 = vmatprep.subr.bf16.mxu0 0
    %184 = vmatpush2.bf16.msra.mxu0 0
    %185 = vmatprep.subr.bf16.mxu0 0
    %186 = vmatpush2.bf16.msra.mxu0 0
    %187 = vmatprep.subr.bf16.mxu0 0
    %188 = vmatpush2.bf16.msra.mxu0 0
    %189 = vmatprep.subr.bf16.mxu0 0
    %190 = vmatpush2.bf16.msra.mxu0 0
    %191 = vmatprep.subr.bf16.mxu0 0
    %192 = vmatpush2.bf16.msra.mxu0 0
    %193 = vmatprep.subr.bf16.mxu0 0
    %194 = vmatpush2.bf16.msra.mxu0 0
    %195 = vmatprep.mubr.bf16.mxu0 0
    %196 = vmatmul.mubr.bf16.gmra.mxu0 %v161
    %v197 = vpop.f32.mrf.mxu0
    %v198 = vadd.f32 0.0, %v197
    %v199 = vpop.f32.mrf.mxu0
    %v200 = vpop.f32.mrf.mxu0
    %v201 = vadd.f32 0.0, %v200
    %v202 = vpop.f32.mrf.mxu0
    %203 = vdwg.mxu0
    %v206 = vunpack.c.l.b16 %v141
    %v207 = vunpack.c.l.b16 %v142
    %v208 = vpack.c.b16 %v207, %v206
    %v211 = vunpack.c.l.b16 %v143
    %v212 = vunpack.c.l.b16 %v144
    %v213 = vpack.c.b16 %v212, %v211
    %v216 = vsel %vm96, %v208, 0
    %218 = vmatprep.subr.bf16.mxu0 0
    %219 = vmatpush1.bf16.msra.mxu0 0
    %220 = vmatprep.subr.bf16.mxu0 0
    %221 = vmatpush1.bf16.msra.mxu0 0
    %222 = vmatprep.subr.bf16.mxu0 0
    %223 = vmatpush1.bf16.msra.mxu0 0
    %224 = vmatprep.subr.bf16.mxu0 0
    %225 = vmatpush1.bf16.msra.mxu0 0
    %226 = vmatprep.subr.bf16.mxu0 0
    %227 = vmatpush1.bf16.msra.mxu0 0
    %228 = vmatprep.subr.bf16.mxu0 0
    %229 = vmatpush1.bf16.msra.mxu0 0
    %230 = vmatprep.subr.bf16.mxu0 0
    %231 = vmatpush1.bf16.msra.mxu0 0
    %232 = vmatprep.subr.bf16.mxu0 0
    %233 = vmatpush1.bf16.msra.mxu0 %v213
    %234 = vmatprep.subr.bf16.mxu0 0
    %235 = vmatpush2.bf16.msra.mxu0 0
    %236 = vmatprep.subr.bf16.mxu0 0
    %237 = vmatpush2.bf16.msra.mxu0 0
    %238 = vmatprep.subr.bf16.mxu0 0
    %239 = vmatpush2.bf16.msra.mxu0 0
    %240 = vmatprep.subr.bf16.mxu0 0
    %241 = vmatpush2.bf16.msra.mxu0 0
    %242 = vmatprep.subr.bf16.mxu0 0
    %243 = vmatpush2.bf16.msra.mxu0 0
    %244 = vmatprep.subr.bf16.mxu0 0
    %245 = vmatpush2.bf16.msra.mxu0 0
    %246 = vmatprep.subr.bf16.mxu0 0
    %247 = vmatpush2.bf16.msra.mxu0 0
    %248 = vmatprep.subr.bf16.mxu0 0
    %249 = vmatpush2.bf16.msra.mxu0 0
    %250 = vmatprep.mubr.bf16.mxu0 0
    %251 = vmatmul.mubr.bf16.gmra.mxu0 %v216
    %v252 = vpop.f32.mrf.mxu0
    %v253 = vadd.f32 %v198, %v252
    %v254 = vpop.f32.mrf.mxu0
    %v255 = vpop.f32.mrf.mxu0
    %v256 = vadd.f32 %v201, %v255
    %v257 = vpop.f32.mrf.mxu0
    %258 = vdwg.mxu0
    %v259 = vpack.c.bf16 %v138, %v135
    %v260 = vld [vmem:[%s6] sm:$0xf]
    %vm261 = vcmask 64512
    %v263 = vsel %vm261, %v259, 0
    %vm265 = vcmask 1043456
    %v267 = vsel %vm265, %v260, 0
    %269 = vmatprep.subr.bf16.mxu0 0
    %270 = vmatpush1.bf16.msra.mxu0 0
    %271 = vmatprep.subr.bf16.mxu0 0
    %272 = vmatpush1.bf16.msra.mxu0 0
    %273 = vmatprep.subr.bf16.mxu0 0
    %274 = vmatpush1.bf16.msra.mxu0 0
    %275 = vmatprep.subr.bf16.mxu0 0
    %276 = vmatpush1.bf16.msra.mxu0 0
    %277 = vmatprep.subr.bf16.mxu0 0
    %278 = vmatpush1.bf16.msra.mxu0 0
    %279 = vmatprep.subr.bf16.mxu0 0
    %280 = vmatpush1.bf16.msra.mxu0 0
    %281 = vmatprep.subr.bf16.mxu0 0
    %282 = vmatpush1.bf16.msra.mxu0 0
    %283 = vmatprep.subr.bf16.mxu0 0
    %284 = vmatpush1.bf16.msra.mxu0 %v267
    %285 = vmatprep.subr.bf16.mxu0 0
    %286 = vmatpush2.bf16.msra.mxu0 0
    %287 = vmatprep.subr.bf16.mxu0 0
    %288 = vmatpush2.bf16.msra.mxu0 0
    %289 = vmatprep.subr.bf16.mxu0 0
    %290 = vmatpush2.bf16.msra.mxu0 0
    %291 = vmatprep.subr.bf16.mxu0 0
    %292 = vmatpush2.bf16.msra.mxu0 0
    %293 = vmatprep.subr.bf16.mxu0 0
    %294 = vmatpush2.bf16.msra.mxu0 0
    %295 = vmatprep.subr.bf16.mxu0 0
    %296 = vmatpush2.bf16.msra.mxu0 0
    %297 = vmatprep.subr.bf16.mxu0 0
    %298 = vmatpush2.bf16.msra.mxu0 0
    %299 = vmatprep.subr.bf16.mxu0 0
    %300 = vmatpush2.bf16.msra.mxu0 0
    %301 = vmatprep.mubr.bf16.mxu0 0
    %302 = vmatmul.mubr.bf16.gmra.mxu0 %v263
    %v303 = vpop.f32.mrf.mxu0
    %v304 = vadd.f32 0.0, %v303
    %v305 = vpop.f32.mrf.mxu0
    %v306 = vpop.f32.mrf.mxu0
    %v307 = vadd.f32 0.0, %v306
    %v308 = vpop.f32.mrf.mxu0
    %309 = vdwg.mxu0
    %v310 = vadd.f32 %v253, %v304
    %v311 = vadd.f32 %v256, %v307
    %v312 = vld [vmem:[%s7] sm:$0x1]
    %v314 = vlaneseq
    %v315 = vshrl.u32 %v314, 7
    %v316 = vsub.s32 0, %v315
    %v317 = vrot.slane %v312, %v316
    %v319 = vadd.f32 %v310, %v317
    %v320 = vadd.f32 %v311, %v317
    %v321 = vmax.f32 %v319, 0.0
    %v322 = vmax.f32 %v320, 0.0
    %v323 = vpack.c.bf16 %v322, %v321
    %v324 = vld [vmem:[#allocation2] sm:$0xf]
    %v325 = vld [vmem:[#allocation2 + $0x4] sm:$0xf]
    %v326 = vld [vmem:[#allocation2 + $0x8] sm:$0xf]
    %v327 = vld [vmem:[#allocation2 + $0xc] sm:$0xf]
    %v328 = vld [vmem:[#allocation2 + $0x10] sm:$0xf]
    %v329 = vld [vmem:[#allocation2 + $0x14] sm:$0xf]
    %v330 = vld [vmem:[#allocation2 + $0x18] sm:$0xf]
    %v331 = vld [vmem:[#allocation2 + $0x1c] sm:$0xf]
    %v332 = vld [vmem:[#allocation2 + $0x20] sm:$0xf]
    %v333 = vld [vmem:[#allocation2 + $0x24] sm:$0xf]
    %v334 = vld [vmem:[#allocation2 + $0x28] sm:$0xf]
    %v335 = vld [vmem:[#allocation2 + $0x2c] sm:$0xf]
    %v336 = vld [vmem:[#allocation2 + $0x30] sm:$0xf]
    %v337 = vld [vmem:[#allocation2 + $0x34] sm:$0xf]
    %v338 = vld [vmem:[#allocation2 + $0x38] sm:$0xf]
    %v339 = vld [vmem:[#allocation2 + $0x3c] sm:$0xf]
    %v340 = vld [vmem:[%s9] sm:$0x1]
    %v342 = vlaneseq
    %v343 = vshrl.u32 %v342, 7
    %v344 = vsub.s32 0, %v343
    %v345 = vrot.slane %v340, %v344
    %v363 = vunpack.c.l.b16 %v324
    %v364 = vunpack.c.l.b16 %v325
    %v365 = vunpack.c.l.b16 %v326
    %v366 = vunpack.c.l.b16 %v327
    %v367 = vunpack.c.l.b16 %v328
    %v368 = vunpack.c.l.b16 %v329
    %v369 = vunpack.c.l.b16 %v330
    %v370 = vunpack.c.l.b16 %v331
    %v371 = vunpack.c.l.b16 %v332
    %v372 = vunpack.c.l.b16 %v333
    %v373 = vunpack.c.l.b16 %v334
    %v374 = vunpack.c.l.b16 %v335
    %v375 = vunpack.c.l.b16 %v336
    %v376 = vunpack.c.l.b16 %v337
    %v377 = vunpack.c.l.b16 %v338
    %v378 = vunpack.c.l.b16 %v339
    %v379 = vpack.c.b16 %v364, %v363
    %v380 = vpack.c.b16 %v366, %v365
    %v381 = vpack.c.b16 %v368, %v367
    %v382 = vpack.c.b16 %v370, %v369
    %v383 = vpack.c.b16 %v372, %v371
    %v384 = vpack.c.b16 %v374, %v373
    %v385 = vpack.c.b16 %v376, %v375
    %v386 = vpack.c.b16 %v378, %v377
    %395 = vmatprep.subr.bf16.mxu0 0
    %396 = vmatpush1.bf16.msra.mxu0 %v386
    %397 = vmatprep.subr.bf16.mxu0 0
    %398 = vmatpush1.bf16.msra.mxu0 %v385
    %399 = vmatprep.subr.bf16.mxu0 0
    %400 = vmatpush1.bf16.msra.mxu0 %v384
    %401 = vmatprep.subr.bf16.mxu0 0
    %402 = vmatpush1.bf16.msra.mxu0 %v383
    %403 = vmatprep.subr.bf16.mxu0 0
    %404 = vmatpush1.bf16.msra.mxu0 %v382
    %405 = vmatprep.subr.bf16.mxu0 0
    %406 = vmatpush1.bf16.msra.mxu0 %v381
    %407 = vmatprep.subr.bf16.mxu0 0
    %408 = vmatpush1.bf16.msra.mxu0 %v380
    %409 = vmatprep.subr.bf16.mxu0 0
    %410 = vmatpush1.bf16.msra.mxu0 %v379
    %411 = vmatprep.subr.bf16.mxu0 0
    %412 = vmatpush2.bf16.msra.mxu0 0
    %413 = vmatprep.subr.bf16.mxu0 0
    %414 = vmatpush2.bf16.msra.mxu0 0
    %415 = vmatprep.subr.bf16.mxu0 0
    %416 = vmatpush2.bf16.msra.mxu0 0
    %417 = vmatprep.subr.bf16.mxu0 0
    %418 = vmatpush2.bf16.msra.mxu0 0
    %419 = vmatprep.subr.bf16.mxu0 0
    %420 = vmatpush2.bf16.msra.mxu0 0
    %421 = vmatprep.subr.bf16.mxu0 0
    %422 = vmatpush2.bf16.msra.mxu0 0
    %423 = vmatprep.subr.bf16.mxu0 0
    %424 = vmatpush2.bf16.msra.mxu0 0
    %425 = vmatprep.subr.bf16.mxu0 0
    %426 = vmatpush2.bf16.msra.mxu0 0
    %427 = vmatprep.mubr.bf16.mxu0 0
    %428 = vmatmul.mubr.bf16.gmra.mxu0 %v323
    %v429 = vpop.f32.mrf.mxu0
    %v430 = vadd.f32 %v345, %v429
    %v431 = vpop.f32.mrf.mxu0
    %v432 = vpop.f32.mrf.mxu0
    %v433 = vadd.f32 %v345, %v432
    %v434 = vpop.f32.mrf.mxu0
    %435 = vdwg.mxu0
    %v436 = vmax.f32 %v430, 0.0
    %v437 = vmax.f32 %v433, 0.0
    %v438 = vpack.c.bf16 %v437, %v436
    %v439 = vld [vmem:[#allocation5] sm:$0xf]
    %v440 = vld [vmem:[#allocation5 + $0x4] sm:$0xf]
    %v441 = vld [vmem:[#allocation5 + $0x8] sm:$0xf]
    %v442 = vld [vmem:[#allocation5 + $0xc] sm:$0xf]
    %v443 = vld [vmem:[#allocation5 + $0x10] sm:$0xf]
    %v444 = vld [vmem:[#allocation5 + $0x14] sm:$0xf]
    %v445 = vld [vmem:[#allocation5 + $0x18] sm:$0xf]
    %v446 = vld [vmem:[#allocation5 + $0x1c] sm:$0xf]
    %v447 = vld [vmem:[#allocation5 + $0x20] sm:$0xf]
    %v448 = vld [vmem:[#allocation5 + $0x24] sm:$0xf]
    %v449 = vld [vmem:[#allocation5 + $0x28] sm:$0xf]
    %v450 = vld [vmem:[#allocation5 + $0x2c] sm:$0xf]
    %v451 = vld [vmem:[#allocation5 + $0x30] sm:$0xf]
    %v452 = vld [vmem:[#allocation5 + $0x34] sm:$0xf]
    %v453 = vld [vmem:[#allocation5 + $0x38] sm:$0xf]
    %v454 = vld [vmem:[#allocation5 + $0x3c] sm:$0xf]
    %v455 = vld [vmem:[%s11] sm:$0x1]
    %v457 = vlaneseq
    %v458 = vshrl.u32 %v457, 7
    %v459 = vsub.s32 0, %v458
    %v460 = vrot.slane %v455, %v459
    %v478 = vunpack.c.l.b16 %v439
    %v479 = vunpack.c.l.b16 %v440
    %v480 = vunpack.c.l.b16 %v441
    %v481 = vunpack.c.l.b16 %v442
    %v482 = vunpack.c.l.b16 %v443
    %v483 = vunpack.c.l.b16 %v444
    %v484 = vunpack.c.l.b16 %v445
    %v485 = vunpack.c.l.b16 %v446
    %v486 = vunpack.c.l.b16 %v447
    %v487 = vunpack.c.l.b16 %v448
    %v488 = vunpack.c.l.b16 %v449
    %v489 = vunpack.c.l.b16 %v450
    %v490 = vunpack.c.l.b16 %v451
    %v491 = vunpack.c.l.b16 %v452
    %v492 = vunpack.c.l.b16 %v453
    %v493 = vunpack.c.l.b16 %v454
    %v494 = vpack.c.b16 %v479, %v478
    %v495 = vpack.c.b16 %v481, %v480
    %v496 = vpack.c.b16 %v483, %v482
    %v497 = vpack.c.b16 %v485, %v484
    %v498 = vpack.c.b16 %v487, %v486
    %v499 = vpack.c.b16 %v489, %v488
    %v500 = vpack.c.b16 %v491, %v490
    %v501 = vpack.c.b16 %v493, %v492
    %510 = vmatprep.subr.bf16.mxu0 0
    %511 = vmatpush1.bf16.msra.mxu0 %v501
    %512 = vmatprep.subr.bf16.mxu0 0
    %513 = vmatpush1.bf16.msra.mxu0 %v500
    %514 = vmatprep.subr.bf16.mxu0 0
    %515 = vmatpush1.bf16.msra.mxu0 %v499
    %516 = vmatprep.subr.bf16.mxu0 0
    %517 = vmatpush1.bf16.msra.mxu0 %v498
    %518 = vmatprep.subr.bf16.mxu0 0
    %519 = vmatpush1.bf16.msra.mxu0 %v497
    %520 = vmatprep.subr.bf16.mxu0 0
    %521 = vmatpush1.bf16.msra.mxu0 %v496
    %522 = vmatprep.subr.bf16.mxu0 0
    %523 = vmatpush1.bf16.msra.mxu0 %v495
    %524 = vmatprep.subr.bf16.mxu0 0
    %525 = vmatpush1.bf16.msra.mxu0 %v494
    %526 = vmatprep.subr.bf16.mxu0 0
    %527 = vmatpush2.bf16.msra.mxu0 0
    %528 = vmatprep.subr.bf16.mxu0 0
    %529 = vmatpush2.bf16.msra.mxu0 0
    %530 = vmatprep.subr.bf16.mxu0 0
    %531 = vmatpush2.bf16.msra.mxu0 0
    %532 = vmatprep.subr.bf16.mxu0 0
    %533 = vmatpush2.bf16.msra.mxu0 0
    %534 = vmatprep.subr.bf16.mxu0 0
    %535 = vmatpush2.bf16.msra.mxu0 0
    %536 = vmatprep.subr.bf16.mxu0 0
    %537 = vmatpush2.bf16.msra.mxu0 0
    %538 = vmatprep.subr.bf16.mxu0 0
    %539 = vmatpush2.bf16.msra.mxu0 0
    %540 = vmatprep.subr.bf16.mxu0 0
    %541 = vmatpush2.bf16.msra.mxu0 0
    %542 = vmatprep.mubr.bf16.mxu0 0
    %543 = vmatmul.mubr.bf16.gmra.mxu0 %v438
    %v544 = vpop.f32.mrf.mxu0
    %v545 = vadd.f32 %v460, %v544
    %v546 = vpop.f32.mrf.mxu0
    %v547 = vpop.f32.mrf.mxu0
    %v548 = vadd.f32 %v460, %v547
    %v549 = vpop.f32.mrf.mxu0
    %550 = vdwg.mxu0
    %551 = vst [vmem:[#allocation7] sm:$0xff] %v545
    %552 = vst [vmem:[#allocation7 + $0x8] sm:$0xff] %v548
    // Predicated region
    $region58: #{tpu_custom_call.1} parent=1 // pred_check
      _
    $region59: #{tpu_custom_call.1} parent=1 // pred_check_branch
      %554 = sbr.rel (0) target = $region61
    $region60: #{tpu_custom_call.1} parent=1 // pred_region
      %s556 = ssub.s32 256, 256
      %557 = vsyncadd [#allocation4], %s556
      %s558 = sshll.u32 [#allocation7], 4
      %s559 = int_to_ptr.vmem [resolvable:$true] %s558
      %564 = dma.vmem_to_hbm [thread:$0]  %s559, 256, %s12, [#allocation4], 128, 128, 8
    $region61: #{tpu_custom_call.1} parent=1 // pred_fallthru
      _
    // Predicated region
    $region62: #{tpu_custom_call.1} parent=1 // pred_check
      _
    $region63: #{tpu_custom_call.1} parent=1 // pred_check_branch
      %566 = sbr.rel (0) target = $region65
    $region64: #{tpu_custom_call.1} parent=1 // pred_region
      %567 = dma.done [#allocation4], 256
    $region65: #{tpu_custom_call.1} parent=1 // pred_fallthru
      _
    %568 = vsyncpa [#allocation3], 1
    %569 = vsyncpa [#allocation6], 1
    %570 = vsyncpa [#allocation4], 1

</llo_original>
